<compile_context>
chip_gen: v7x
topology: tpu7x:2x2x1
jax: 0.10.0
libtpu: 0.0.40
codegen_flags: <defaults>
</compile_context>

<pallas_src>
import jax
import jax.numpy as jnp
from jax.experimental import pallas as pl
from jax.experimental.pallas import tpu as pltpu


def _silu(h):
    # h * sigmoid(h); sigmoid's reciprocal runs on the EUP slot and is
    # numerically stable for large-magnitude negatives.
    return h * jax.nn.sigmoid(h)


def mlp_kernel(x_ref, w1_ref, b1_ref, w2_ref, b2_ref, w3_ref, b3_ref,
               w4_ref, b4_ref, o_ref):
    # Fused 4-layer MLP on one lane-dense batch tile.
    # x_ref: (D, tile_n); weights (out, in); biases (out, 1); o_ref: (16, tile_n).
    x = x_ref[...]

    h = jnp.dot(w1_ref[...], x, preferred_element_type=jnp.float32) + b1_ref[...]
    h = _silu(h)

    h = jnp.dot(w2_ref[...], h, preferred_element_type=jnp.float32) + b2_ref[...]
    h = _silu(h)

    h = jnp.dot(w3_ref[...], h, preferred_element_type=jnp.float32) + b3_ref[...]
    h = _silu(h)

    h = jnp.dot(w4_ref[...], h, preferred_element_type=jnp.float32) + b4_ref[...]

    o_ref[...] = h.astype(o_ref.dtype)


def _round_up(x, m):
    return ((x + m - 1) // m) * m


def net_forward(x, params, *, tile_n=1024):
    """Forward pass of Net.

    x: (N, pfc_input_dim) f32, row-major batch layout (PyTorch convention).
    params: (w1, b1, w2, b2, w3, b3, w4, b4) with w_i of shape (out, in) and
            b_i of shape (out, 1).
    Returns: (N, hidden_dim) f32.
    """
    N, D = x.shape
    w1, b1, w2, b2, w3, b3, w4, b4 = params
    hidden = w4.shape[0]

    # Lane-dense tiling: tile must be a multiple of 128; shrink for tiny N so we
    # don't pad a small demo batch up to the full default tile.
    tile = min(tile_n, _round_up(N, 128))
    tile = _round_up(tile, 128)
    n_pad = _round_up(N, tile)
    grid = n_pad // tile

    # Batch on lanes: (D, n_pad), zero-padded ragged tail.
    x_t = jnp.zeros((D, n_pad), x.dtype).at[:, :N].set(x.T)

    weight_args = [w1, b1, w2, b2, w3, b3, w4, b4]

    def resident_spec(a):
        # Full-array block, same block every grid step (weights stay in VMEM).
        return pl.BlockSpec(a.shape, lambda i: (0, 0))

    # Advisory cost estimate: tiny, memory-bound custom call.
    flops = 2 * n_pad * sum(int(w.shape[0]) * int(w.shape[1])
                            for w in (w1, w2, w3, w4))
    transcendentals = n_pad * (int(w1.shape[0]) + int(w2.shape[0]) + int(w3.shape[0]))
    bytes_accessed = 4 * (D * n_pad + hidden * n_pad
                          + sum(int(a.size) for a in weight_args))
    cost = pl.CostEstimate(flops=flops,
                           transcendentals=transcendentals,
                           bytes_accessed=bytes_accessed)

    out_t = pl.pallas_call(
        mlp_kernel,
        out_shape=jax.ShapeDtypeStruct((hidden, n_pad), x.dtype),
        grid=(grid,),
        in_specs=[pl.BlockSpec((D, tile), lambda i: (0, i))]
                 + [resident_spec(a) for a in weight_args],
        out_specs=pl.BlockSpec((hidden, tile), lambda i: (0, i)),
        compiler_params=pltpu.CompilerParams(
            dimension_semantics=("parallel",)),
        cost_estimate=cost,
    )(x_t, *weight_args)

    # Back to the caller's (N, hidden) layout; single transpose in the wrapper.
    return out_t[:, :N].T


def init_params(key, pfc_input_dim=13, hidden_dim=16, dtype=jnp.float32):
    """Deterministic synthetic init. Weights stored (out, in); biases (out, 1)."""
    dims = [pfc_input_dim, hidden_dim // 2, hidden_dim, 2 * hidden_dim, hidden_dim]
    params = []
    for i in range(4):
        key, kw, kb = jax.random.split(key, 3)
        fan_in, fan_out = dims[i], dims[i + 1]
        bound = 1.0 / jnp.sqrt(fan_in)
        w = jax.random.uniform(kw, (fan_out, fan_in), dtype, -bound, bound)
        b = jax.random.uniform(kb, (fan_out, 1), dtype, -bound, bound)
        params += [w, b]
    return tuple(params)


def reference_forward(x, params):
    w1, b1, w2, b2, w3, b3, w4, b4 = params
    h = jax.nn.silu(x @ w1.T + b1.T)
    h = jax.nn.silu(h @ w2.T + b2.T)
    h = jax.nn.silu(h @ w3.T + b3.T)
    return h @ w4.T + b4.T


if __name__ == "__main__":
    key = jax.random.PRNGKey(0)
    k_param, k_x = jax.random.split(key)

    pfc_input_dim, hidden_dim = 13, 16
    batch = 8  # deliberately not a multiple of the tile: exercises padding path

    params = init_params(k_param, pfc_input_dim, hidden_dim)
    x_pfc = jax.random.normal(k_x, (batch, pfc_input_dim), jnp.float32)

    out = net_forward(x_pfc, params)
    out = jax.block_until_ready(out)

    ref = reference_forward(x_pfc, params)
    assert out.shape == (batch, hidden_dim)
    assert jnp.allclose(out, ref, atol=1e-5, rtol=1e-5), "mismatch vs pure-JAX reference"

    print("KERNEL_OK")
</pallas_src>

<mosaic_0001>
module attributes {stable_mosaic.version = 11 : i64} {
  func.func @mlp_kernel(%arg0: i32, %arg1: memref<13x128xf32, #tpu.memory_space<vmem>>, %arg2: memref<8x13xf32, #tpu.memory_space<vmem>>, %arg3: memref<8x1xf32, #tpu.memory_space<vmem>>, %arg4: memref<16x8xf32, #tpu.memory_space<vmem>>, %arg5: memref<16x1xf32, #tpu.memory_space<vmem>>, %arg6: memref<32x16xf32, #tpu.memory_space<vmem>>, %arg7: memref<32x1xf32, #tpu.memory_space<vmem>>, %arg8: memref<16x32xf32, #tpu.memory_space<vmem>>, %arg9: memref<16x1xf32, #tpu.memory_space<vmem>>, %arg10: memref<16x128xf32, #tpu.memory_space<vmem>>) attributes {dimension_semantics = [#tpu.dimension_semantics<parallel>], iteration_bounds = array<i64: 1>, scalar_prefetch = 0 : i64, scratch_operands = 0 : i64, tpu.core_type = #tpu.core_type<tc>, window_params = [{transform_indices = @transform_0, window_bounds = array<i64: 13, 128>}, {pipeline_mode = #tpu.pipeline_mode<synchronous>, transform_indices = @transform_1, window_bounds = array<i64: 8, 13>}, {pipeline_mode = #tpu.pipeline_mode<synchronous>, transform_indices = @transform_2, window_bounds = array<i64: 8, 1>}, {pipeline_mode = #tpu.pipeline_mode<synchronous>, transform_indices = @transform_3, window_bounds = array<i64: 16, 8>}, {pipeline_mode = #tpu.pipeline_mode<synchronous>, transform_indices = @transform_4, window_bounds = array<i64: 16, 1>}, {pipeline_mode = #tpu.pipeline_mode<synchronous>, transform_indices = @transform_5, window_bounds = array<i64: 32, 16>}, {pipeline_mode = #tpu.pipeline_mode<synchronous>, transform_indices = @transform_6, window_bounds = array<i64: 32, 1>}, {pipeline_mode = #tpu.pipeline_mode<synchronous>, transform_indices = @transform_7, window_bounds = array<i64: 16, 32>}, {pipeline_mode = #tpu.pipeline_mode<synchronous>, transform_indices = @transform_8, window_bounds = array<i64: 16, 1>}, {transform_indices = @transform_9, window_bounds = array<i64: 16, 128>}]} {
    %c0 = arith.constant 0 : index
    %c0_0 = arith.constant 0 : index
    %0 = vector.load %arg1[%c0, %c0_0] : memref<13x128xf32, #tpu.memory_space<vmem>>, vector<13x128xf32>
    %c0_1 = arith.constant 0 : index
    %c0_2 = arith.constant 0 : index
    %1 = vector.load %arg2[%c0_1, %c0_2] : memref<8x13xf32, #tpu.memory_space<vmem>>, vector<8x13xf32>
    %cst = arith.constant dense<0.000000e+00> : vector<8x128xf32>
    %2 = tpu.matmul %1, %0, %cst {dimension_numbers = #tpu.dot_dimension_numbers<[1], [0], [0], [1], [0, 0, 1, 1], [], []>} : vector<8x13xf32>, vector<13x128xf32>, vector<8x128xf32> -> vector<8x128xf32>
    %c0_3 = arith.constant 0 : index
    %c0_4 = arith.constant 0 : index
    %3 = vector.load %arg3[%c0_3, %c0_4] : memref<8x1xf32, #tpu.memory_space<vmem>>, vector<8x1xf32>
    %4 = vector.broadcast %3 : vector<8x1xf32> to vector<8x128xf32>
    %5 = arith.addf %2, %4 : vector<8x128xf32>
    %6 = arith.negf %5 : vector<8x128xf32>
    %7 = math.exp %6 : vector<8x128xf32>
    %cst_5 = arith.constant 1.000000e+00 : f32
    %8 = vector.broadcast %cst_5 : f32 to vector<8x128xf32>
    %9 = arith.addf %8, %7 : vector<8x128xf32>
    %10 = arith.divf %8, %9 : vector<8x128xf32>
    %11 = arith.mulf %5, %10 : vector<8x128xf32>
    %c0_6 = arith.constant 0 : index
    %c0_7 = arith.constant 0 : index
    %12 = vector.load %arg4[%c0_6, %c0_7] : memref<16x8xf32, #tpu.memory_space<vmem>>, vector<16x8xf32>
    %cst_8 = arith.constant dense<0.000000e+00> : vector<16x128xf32>
    %13 = tpu.matmul %12, %11, %cst_8 {dimension_numbers = #tpu.dot_dimension_numbers<[1], [0], [0], [1], [0, 0, 1, 1], [], []>} : vector<16x8xf32>, vector<8x128xf32>, vector<16x128xf32> -> vector<16x128xf32>
    %c0_9 = arith.constant 0 : index
    %c0_10 = arith.constant 0 : index
    %14 = vector.load %arg5[%c0_9, %c0_10] : memref<16x1xf32, #tpu.memory_space<vmem>>, vector<16x1xf32>
    %15 = vector.broadcast %14 : vector<16x1xf32> to vector<16x128xf32>
    %16 = arith.addf %13, %15 : vector<16x128xf32>
    %17 = arith.negf %16 : vector<16x128xf32>
    %18 = math.exp %17 : vector<16x128xf32>
    %cst_11 = arith.constant 1.000000e+00 : f32
    %19 = vector.broadcast %cst_11 : f32 to vector<16x128xf32>
    %20 = arith.addf %19, %18 : vector<16x128xf32>
    %21 = arith.divf %19, %20 : vector<16x128xf32>
    %22 = arith.mulf %16, %21 : vector<16x128xf32>
    %c0_12 = arith.constant 0 : index
    %c0_13 = arith.constant 0 : index
    %23 = vector.load %arg6[%c0_12, %c0_13] : memref<32x16xf32, #tpu.memory_space<vmem>>, vector<32x16xf32>
    %cst_14 = arith.constant dense<0.000000e+00> : vector<32x128xf32>
    %24 = tpu.matmul %23, %22, %cst_14 {dimension_numbers = #tpu.dot_dimension_numbers<[1], [0], [0], [1], [0, 0, 1, 1], [], []>} : vector<32x16xf32>, vector<16x128xf32>, vector<32x128xf32> -> vector<32x128xf32>
    %c0_15 = arith.constant 0 : index
    %c0_16 = arith.constant 0 : index
    %25 = vector.load %arg7[%c0_15, %c0_16] : memref<32x1xf32, #tpu.memory_space<vmem>>, vector<32x1xf32>
    %26 = vector.broadcast %25 : vector<32x1xf32> to vector<32x128xf32>
    %27 = arith.addf %24, %26 : vector<32x128xf32>
    %28 = arith.negf %27 : vector<32x128xf32>
    %29 = math.exp %28 : vector<32x128xf32>
    %cst_17 = arith.constant 1.000000e+00 : f32
    %30 = vector.broadcast %cst_17 : f32 to vector<32x128xf32>
    %31 = arith.addf %30, %29 : vector<32x128xf32>
    %32 = arith.divf %30, %31 : vector<32x128xf32>
    %33 = arith.mulf %27, %32 : vector<32x128xf32>
    %c0_18 = arith.constant 0 : index
    %c0_19 = arith.constant 0 : index
    %34 = vector.load %arg8[%c0_18, %c0_19] : memref<16x32xf32, #tpu.memory_space<vmem>>, vector<16x32xf32>
    %cst_20 = arith.constant dense<0.000000e+00> : vector<16x128xf32>
    %35 = tpu.matmul %34, %33, %cst_20 {dimension_numbers = #tpu.dot_dimension_numbers<[1], [0], [0], [1], [0, 0, 1, 1], [], []>} : vector<16x32xf32>, vector<32x128xf32>, vector<16x128xf32> -> vector<16x128xf32>
    %c0_21 = arith.constant 0 : index
    %c0_22 = arith.constant 0 : index
    %36 = vector.load %arg9[%c0_21, %c0_22] : memref<16x1xf32, #tpu.memory_space<vmem>>, vector<16x1xf32>
    %37 = vector.broadcast %36 : vector<16x1xf32> to vector<16x128xf32>
    %38 = arith.addf %35, %37 : vector<16x128xf32>
    %c0_23 = arith.constant 0 : index
    %c0_24 = arith.constant 0 : index
    %39 = vector.load %arg10[%c0_23, %c0_24] : memref<16x128xf32, #tpu.memory_space<vmem>>, vector<16x128xf32>
    tpu.vector_store %arg10[%c0_23, %c0_24], %38 {strides = array<i32>} : memref<16x128xf32, #tpu.memory_space<vmem>>, vector<16x128xf32>,
    return
  }
  func.func @transform_0(%arg0: i32) -> (i32, i32) {
    %c0_i32 = arith.constant 0 : i32
    %c0_i32_0 = arith.constant 0 : i32
    return %c0_i32, %arg0 : i32, i32
  }
  func.func @transform_1(%arg0: i32) -> (i32, i32) {
    %c0_i32 = arith.constant 0 : i32
    %c0_i32_0 = arith.constant 0 : i32
    %c0_i32_1 = arith.constant 0 : i32
    return %c0_i32, %c0_i32_0 : i32, i32
  }
  func.func @transform_2(%arg0: i32) -> (i32, i32) {
    %c0_i32 = arith.constant 0 : i32
    %c0_i32_0 = arith.constant 0 : i32
    %c0_i32_1 = arith.constant 0 : i32
    return %c0_i32, %c0_i32_0 : i32, i32
  }
  func.func @transform_3(%arg0: i32) -> (i32, i32) {
    %c0_i32 = arith.constant 0 : i32
    %c0_i32_0 = arith.constant 0 : i32
    %c0_i32_1 = arith.constant 0 : i32
    return %c0_i32, %c0_i32_0 : i32, i32
  }
  func.func @transform_4(%arg0: i32) -> (i32, i32) {
    %c0_i32 = arith.constant 0 : i32
    %c0_i32_0 = arith.constant 0 : i32
    %c0_i32_1 = arith.constant 0 : i32
    return %c0_i32, %c0_i32_0 : i32, i32
  }
  func.func @transform_5(%arg0: i32) -> (i32, i32) {
    %c0_i32 = arith.constant 0 : i32
    %c0_i32_0 = arith.constant 0 : i32
    %c0_i32_1 = arith.constant 0 : i32
    return %c0_i32, %c0_i32_0 : i32, i32
  }
  func.func @transform_6(%arg0: i32) -> (i32, i32) {
    %c0_i32 = arith.constant 0 : i32
    %c0_i32_0 = arith.constant 0 : i32
    %c0_i32_1 = arith.constant 0 : i32
    return %c0_i32, %c0_i32_0 : i32, i32
  }
  func.func @transform_7(%arg0: i32) -> (i32, i32) {
    %c0_i32 = arith.constant 0 : i32
    %c0_i32_0 = arith.constant 0 : i32
    %c0_i32_1 = arith.constant 0 : i32
    return %c0_i32, %c0_i32_0 : i32, i32
  }
  func.func @transform_8(%arg0: i32) -> (i32, i32) {
    %c0_i32 = arith.constant 0 : i32
    %c0_i32_0 = arith.constant 0 : i32
    %c0_i32_1 = arith.constant 0 : i32
    return %c0_i32, %c0_i32_0 : i32, i32
  }
  func.func @transform_9(%arg0: i32) -> (i32, i32) {
    %c0_i32 = arith.constant 0 : i32
    %c0_i32_0 = arith.constant 0 : i32
    return %c0_i32, %arg0 : i32, i32
  }
}

</mosaic_0001>

<llo_original>
// kernel: tpu_custom_call.1
$region0: #{tpu_custom_call.1}
  #allocation0 [shape = 'u32[]', space=smem, size = 0x4, offset = 0x4, fixed_abs, tag = 'smem constant byte address 0x4 - core index']
  #allocation1 [shape = 'u32[144,128]{1,0:T(1,128)}', space=vmem, size = 0x12000, scoped, tag = 'internal scratch']
  %s0 = inlined_call_operand.vmem [shape: f32[13,128], index: 0, kind: input, shape index: {}]
  %s1 = inlined_call_operand.vmem [shape: f32[8,13], index: 1, kind: input, shape index: {}]
  %s2 = inlined_call_operand.vmem [shape: f32[8,1], index: 2, kind: input, shape index: {}]
  %s3 = inlined_call_operand.vmem [shape: f32[16,8], index: 3, kind: input, shape index: {}]
  %s4 = inlined_call_operand.vmem [shape: f32[16,1], index: 4, kind: input, shape index: {}]
  %s5 = inlined_call_operand.vmem [shape: f32[32,16], index: 5, kind: input, shape index: {}]
  %s6 = inlined_call_operand.vmem [shape: f32[32,1], index: 6, kind: input, shape index: {}]
  %s7 = inlined_call_operand.vmem [shape: f32[16,32], index: 7, kind: input, shape index: {}]
  %s8 = inlined_call_operand.vmem [shape: f32[16,1], index: 8, kind: input, shape index: {}]
  %s9 = inlined_call_operand.hbm [shape: f32[16,128], index: 9, kind: output, shape index: {}]
  %s10 = sld [smem:[#allocation0]]
  $region46: #{tpu_custom_call.1} parent=0
    _
  %s12 = ssub.s32 1, %s10
  %s13 = scalar_select 0, %s12, %s10
  $region1: #{tpu_custom_call.1} parent=0
    #allocation2 [shape = 'u8[8192]{0}', space=vmem, size = 0x2000, scoped, tag = 'output window, operand 0, single buffered']
    #allocation3 [shape = 's32[1]{0}', space=sflag, size = 0x4, scoped, tag = 'scoped memory for tpu_custom_call.1']
    %14 = vsyncpa [#allocation3], 0
    // Predicated region
    $region2: #{tpu_custom_call.1} parent=1 // pred_check
      _
    $region3: #{tpu_custom_call.1} parent=1 // pred_check_branch
      %16 = sbr.rel (0) target = $region5
    $region4: #{tpu_custom_call.1} parent=1 // pred_region
      _
    $region5: #{tpu_custom_call.1} parent=1 // pred_fallthru
      _
    // Predicated region
    $region6: #{tpu_custom_call.1} parent=1 // pred_check
      _
    $region7: #{tpu_custom_call.1} parent=1 // pred_check_branch
      %18 = sbr.rel (0) target = $region9
    $region8: #{tpu_custom_call.1} parent=1 // pred_region
      _
    $region9: #{tpu_custom_call.1} parent=1 // pred_fallthru
      _
    // Predicated region
    $region10: #{tpu_custom_call.1} parent=1 // pred_check
      _
    $region11: #{tpu_custom_call.1} parent=1 // pred_check_branch
      %20 = sbr.rel (0) target = $region13
    $region12: #{tpu_custom_call.1} parent=1 // pred_region
      _
    $region13: #{tpu_custom_call.1} parent=1 // pred_fallthru
      _
    // Predicated region
    $region14: #{tpu_custom_call.1} parent=1 // pred_check
      _
    $region15: #{tpu_custom_call.1} parent=1 // pred_check_branch
      %22 = sbr.rel (0) target = $region17
    $region16: #{tpu_custom_call.1} parent=1 // pred_region
      _
    $region17: #{tpu_custom_call.1} parent=1 // pred_fallthru
      _
    // Predicated region
    $region18: #{tpu_custom_call.1} parent=1 // pred_check
      _
    $region19: #{tpu_custom_call.1} parent=1 // pred_check_branch
      %24 = sbr.rel (0) target = $region21
    $region20: #{tpu_custom_call.1} parent=1 // pred_region
      _
    $region21: #{tpu_custom_call.1} parent=1 // pred_fallthru
      _
    // Predicated region
    $region22: #{tpu_custom_call.1} parent=1 // pred_check
      _
    $region23: #{tpu_custom_call.1} parent=1 // pred_check_branch
      %26 = sbr.rel (0) target = $region25
    $region24: #{tpu_custom_call.1} parent=1 // pred_region
      _
    $region25: #{tpu_custom_call.1} parent=1 // pred_fallthru
      _
    // Predicated region
    $region26: #{tpu_custom_call.1} parent=1 // pred_check
      _
    $region27: #{tpu_custom_call.1} parent=1 // pred_check_branch
      %28 = sbr.rel (0) target = $region29
    $region28: #{tpu_custom_call.1} parent=1 // pred_region
      _
    $region29: #{tpu_custom_call.1} parent=1 // pred_fallthru
      _
    // Predicated region
    $region30: #{tpu_custom_call.1} parent=1 // pred_check
      _
    $region31: #{tpu_custom_call.1} parent=1 // pred_check_branch
      %30 = sbr.rel (0) target = $region33
    $region32: #{tpu_custom_call.1} parent=1 // pred_region
      _
    $region33: #{tpu_custom_call.1} parent=1 // pred_fallthru
      _
    // Predicated region
    $region34: #{tpu_custom_call.1} parent=1 // pred_check
      _
    $region35: #{tpu_custom_call.1} parent=1 // pred_check_branch
      %32 = sbr.rel (0) target = $region37
    $region36: #{tpu_custom_call.1} parent=1 // pred_region
      _
    $region37: #{tpu_custom_call.1} parent=1 // pred_fallthru
      _
    %v33 = vld [vmem:[%s0] sm:$0xff]
    %v34 = vld [vmem:[%s0 + $0x8] sm:$0x1f]
    %v35 = vld [vmem:[%s1] sm:$0xff]
    %v36 = vld [vmem:[%s2] sm:$0xff]
    %38 = vset.pattern.permute.xlu0 0
    %39 = vperm.xlu0 %38, %v36
    %v40 = vpop.permute.xlu0 %39
    %vm42 = vcmask 105472
    %v44 = vsel %vm42, %v35, 0
    %vm46 = vcmask 1044480
    %v48 = vsel %vm46, %v34, 0
    %50 = vmatprep.subr.mxu0 0.0
    %51 = vmatpush1.msra.mxu0 %v33
    %52 = vmatprep.subr.mxu0 0.0
    %53 = vmatpush1.msra.mxu0 %v48
    %54 = vmatprep.subr.mxu0 0.0
    %55 = vmatpush1.msra.mxu0 0.0
    %56 = vmatprep.subr.mxu0 0.0
    %57 = vmatpush1.msra.mxu0 0.0
    %58 = vmatprep.subr.mxu0 0.0
    %59 = vmatpush1.msra.mxu0 0.0
    %60 = vmatprep.subr.mxu0 0.0
    %61 = vmatpush1.msra.mxu0 0.0
    %62 = vmatprep.subr.mxu0 0.0
    %63 = vmatpush1.msra.mxu0 0.0
    %64 = vmatprep.subr.mxu0 0.0
    %65 = vmatpush1.msra.mxu0 0.0
    %66 = vmatprep.subr.mxu0 0.0
    %67 = vmatpush1.msra.mxu0 0.0
    %68 = vmatprep.subr.mxu0 0.0
    %69 = vmatpush1.msra.mxu0 0.0
    %70 = vmatprep.subr.mxu0 0.0
    %71 = vmatpush1.msra.mxu0 0.0
    %72 = vmatprep.subr.mxu0 0.0
    %73 = vmatpush1.msra.mxu0 0.0
    %74 = vmatprep.subr.mxu0 0.0
    %75 = vmatpush1.msra.mxu0 0.0
    %76 = vmatprep.subr.mxu0 0.0
    %77 = vmatpush1.msra.mxu0 0.0
    %78 = vmatprep.subr.mxu0 0.0
    %79 = vmatpush1.msra.mxu0 0.0
    %80 = vmatprep.subr.mxu0 0.0
    %81 = vmatpush1.msra.mxu0 0.0
    %82 = vmatprep.subr.mxu0 0.0
    %83 = vmatpush1.msra.mxu0 0.0
    %84 = vmatprep.subr.mxu0 0.0
    %85 = vmatpush1.msra.mxu0 0.0
    %86 = vmatprep.subr.mxu0 0.0
    %87 = vmatpush1.msra.mxu0 0.0
    %88 = vmatprep.subr.mxu0 0.0
    %89 = vmatpush1.msra.mxu0 0.0
    %90 = vmatprep.subr.mxu0 0.0
    %91 = vmatpush1.msra.mxu0 0.0
    %92 = vmatprep.subr.mxu0 0.0
    %93 = vmatpush1.msra.mxu0 0.0
    %94 = vmatprep.subr.mxu0 0.0
    %95 = vmatpush1.msra.mxu0 0.0
    %96 = vmatprep.subr.mxu0 0.0
    %97 = vmatpush1.msra.mxu0 0.0
    %98 = vmatprep.subr.mxu0 0.0
    %99 = vmatpush1.msra.mxu0 0.0
    %100 = vmatprep.subr.mxu0 0.0
    %101 = vmatpush1.msra.mxu0 0.0
    %102 = vmatprep.subr.mxu0 0.0
    %103 = vmatpush1.msra.mxu0 0.0
    %104 = vmatprep.subr.mxu0 0.0
    %105 = vmatpush1.msra.mxu0 0.0
    %106 = vmatprep.subr.mxu0 0.0
    %107 = vmatpush1.msra.mxu0 0.0
    %108 = vmatprep.subr.mxu0 0.0
    %109 = vmatpush1.msra.mxu0 0.0
    %110 = vmatprep.subr.mxu0 0.0
    %111 = vmatpush1.msra.mxu0 0.0
    %112 = vmatprep.subr.mxu0 0.0
    %113 = vmatpush1.msra.mxu0 0.0
    %114 = vmatprep.mubr.f32.mxu0 0.0
    %115 = vmatmul.mubr.f32.gmra.mrb[0].mxu0 %v44
    %v116 = vpop.f32.mrb[0].mxu0
    %v117 = vadd.f32 %v40, %v116
    %v118 = vpop.f32.mrb[0].mxu0
    %119 = vdwg.mxu0
    %v120 = vxor.u32 %v117, 2147483648
    %v121 = vmul.f32 %v120, 1.442695
    %v122 = vpow.pop %v121
    %v123 = vadd.f32 %v122, 1.0
    %v124 = vrcp.pop %v123
    %v125 = vmul.f32 1.0, %v124
    %v126 = vmul.f32 %v117, %v125
    %v127 = vld [vmem:[%s3] sm:$0xff]
    %v128 = vld [vmem:[%s3 + $0x8] sm:$0xff]
    %v129 = vld [vmem:[%s4] sm:$0xff]
    %v130 = vld [vmem:[%s4 + $0x8] sm:$0xff]
    %132 = vset.pattern.permute.xlu0 0
    %133 = vperm.xlu0 %132, %v129
    %v134 = vpop.permute.xlu0 %133
    %137 = vset.pattern.permute.xlu0 0
    %138 = vperm.xlu0 %137, %v130
    %v139 = vpop.permute.xlu0 %138
    %vm141 = vcmask 64512
    %v143 = vsel %vm141, %v127, 0
    %v146 = vsel %vm141, %v128, 0
    %148 = vmatprep.subr.mxu0 0.0
    %149 = vmatpush1.msra.mxu0 %v126
    %150 = vmatprep.subr.mxu0 0.0
    %151 = vmatpush1.msra.mxu0 0.0
    %152 = vmatprep.subr.mxu0 0.0
    %153 = vmatpush1.msra.mxu0 0.0
    %154 = vmatprep.subr.mxu0 0.0
    %155 = vmatpush1.msra.mxu0 0.0
    %156 = vmatprep.subr.mxu0 0.0
    %157 = vmatpush1.msra.mxu0 0.0
    %158 = vmatprep.subr.mxu0 0.0
    %159 = vmatpush1.msra.mxu0 0.0
    %160 = vmatprep.subr.mxu0 0.0
    %161 = vmatpush1.msra.mxu0 0.0
    %162 = vmatprep.subr.mxu0 0.0
    %163 = vmatpush1.msra.mxu0 0.0
    %164 = vmatprep.subr.mxu0 0.0
    %165 = vmatpush1.msra.mxu0 0.0
    %166 = vmatprep.subr.mxu0 0.0
    %167 = vmatpush1.msra.mxu0 0.0
    %168 = vmatprep.subr.mxu0 0.0
    %169 = vmatpush1.msra.mxu0 0.0
    %170 = vmatprep.subr.mxu0 0.0
    %171 = vmatpush1.msra.mxu0 0.0
    %172 = vmatprep.subr.mxu0 0.0
    %173 = vmatpush1.msra.mxu0 0.0
    %174 = vmatprep.subr.mxu0 0.0
    %175 = vmatpush1.msra.mxu0 0.0
    %176 = vmatprep.subr.mxu0 0.0
    %177 = vmatpush1.msra.mxu0 0.0
    %178 = vmatprep.subr.mxu0 0.0
    %179 = vmatpush1.msra.mxu0 0.0
    %180 = vmatprep.subr.mxu0 0.0
    %181 = vmatpush1.msra.mxu0 0.0
    %182 = vmatprep.subr.mxu0 0.0
    %183 = vmatpush1.msra.mxu0 0.0
    %184 = vmatprep.subr.mxu0 0.0
    %185 = vmatpush1.msra.mxu0 0.0
    %186 = vmatprep.subr.mxu0 0.0
    %187 = vmatpush1.msra.mxu0 0.0
    %188 = vmatprep.subr.mxu0 0.0
    %189 = vmatpush1.msra.mxu0 0.0
    %190 = vmatprep.subr.mxu0 0.0
    %191 = vmatpush1.msra.mxu0 0.0
    %192 = vmatprep.subr.mxu0 0.0
    %193 = vmatpush1.msra.mxu0 0.0
    %194 = vmatprep.subr.mxu0 0.0
    %195 = vmatpush1.msra.mxu0 0.0
    %196 = vmatprep.subr.mxu0 0.0
    %197 = vmatpush1.msra.mxu0 0.0
    %198 = vmatprep.subr.mxu0 0.0
    %199 = vmatpush1.msra.mxu0 0.0
    %200 = vmatprep.subr.mxu0 0.0
    %201 = vmatpush1.msra.mxu0 0.0
    %202 = vmatprep.subr.mxu0 0.0
    %203 = vmatpush1.msra.mxu0 0.0
    %204 = vmatprep.subr.mxu0 0.0
    %205 = vmatpush1.msra.mxu0 0.0
    %206 = vmatprep.subr.mxu0 0.0
    %207 = vmatpush1.msra.mxu0 0.0
    %208 = vmatprep.subr.mxu0 0.0
    %209 = vmatpush1.msra.mxu0 0.0
    %210 = vmatprep.subr.mxu0 0.0
    %211 = vmatpush1.msra.mxu0 0.0
    %212 = vmatprep.mubr.f32.mxu0 0.0
    %213 = vmatmul.mubr.f32.gmra.mrb[0].mxu0 %v143
    %v214 = vpop.f32.mrb[0].mxu0
    %v215 = vadd.f32 %v134, %v214
    %v216 = vpop.f32.mrb[0].mxu0
    %217 = vmatprep.mubr.f32.mxu0 0.0
    %218 = vmatmul.mubr.f32.gmra.mrb[0].mxu0 %v146
    %v219 = vpop.f32.mrb[0].mxu0
    %v220 = vadd.f32 %v139, %v219
    %v221 = vpop.f32.mrb[0].mxu0
    %222 = vdwg.mxu0
    %v223 = vxor.u32 %v215, 2147483648
    %v224 = vxor.u32 %v220, 2147483648
    %v225 = vmul.f32 %v223, 1.442695
    %v226 = vpow.pop %v225
    %v227 = vmul.f32 %v224, 1.442695
    %v228 = vpow.pop %v227
    %v229 = vadd.f32 %v226, 1.0
    %v230 = vadd.f32 %v228, 1.0
    %v231 = vrcp.pop %v229
    %v232 = vmul.f32 1.0, %v231
    %v233 = vrcp.pop %v230
    %v234 = vmul.f32 1.0, %v233
    %v235 = vmul.f32 %v215, %v232
    %v236 = vmul.f32 %v220, %v234
    %v237 = vld [vmem:[%s5] sm:$0xff]
    %v238 = vld [vmem:[%s5 + $0x8] sm:$0xff]
    %v239 = vld [vmem:[%s5 + $0x10] sm:$0xff]
    %v240 = vld [vmem:[%s5 + $0x18] sm:$0xff]
    %v241 = vld [vmem:[%s6] sm:$0xff]
    %v242 = vld [vmem:[%s6 + $0x8] sm:$0xff]
    %v243 = vld [vmem:[%s6 + $0x10] sm:$0xff]
    %v244 = vld [vmem:[%s6 + $0x18] sm:$0xff]
    %246 = vset.pattern.permute.xlu0 0
    %247 = vperm.xlu0 %246, %v241
    %v248 = vpop.permute.xlu0 %247
    %251 = vset.pattern.permute.xlu0 0
    %252 = vperm.xlu0 %251, %v242
    %v253 = vpop.permute.xlu0 %252
    %256 = vset.pattern.permute.xlu0 0
    %257 = vperm.xlu0 %256, %v243
    %v258 = vpop.permute.xlu0 %257
    %261 = vset.pattern.permute.xlu0 0
    %262 = vperm.xlu0 %261, %v244
    %v263 = vpop.permute.xlu0 %262
    %vm265 = vcmask 130048
    %v267 = vsel %vm265, %v237, 0
    %v270 = vsel %vm265, %v238, 0
    %v273 = vsel %vm265, %v239, 0
    %v276 = vsel %vm265, %v240, 0
    %278 = vmatprep.subr.mxu0 0.0
    %279 = vmatpush1.msra.mxu0 %v235
    %280 = vmatprep.subr.mxu0 0.0
    %281 = vmatpush1.msra.mxu0 %v236
    %282 = vmatprep.subr.mxu0 0.0
    %283 = vmatpush1.msra.mxu0 0.0
    %284 = vmatprep.subr.mxu0 0.0
    %285 = vmatpush1.msra.mxu0 0.0
    %286 = vmatprep.subr.mxu0 0.0
    %287 = vmatpush1.msra.mxu0 0.0
    %288 = vmatprep.subr.mxu0 0.0
    %289 = vmatpush1.msra.mxu0 0.0
    %290 = vmatprep.subr.mxu0 0.0
    %291 = vmatpush1.msra.mxu0 0.0
    %292 = vmatprep.subr.mxu0 0.0
    %293 = vmatpush1.msra.mxu0 0.0
    %294 = vmatprep.subr.mxu0 0.0
    %295 = vmatpush1.msra.mxu0 0.0
    %296 = vmatprep.subr.mxu0 0.0
    %297 = vmatpush1.msra.mxu0 0.0
    %298 = vmatprep.subr.mxu0 0.0
    %299 = vmatpush1.msra.mxu0 0.0
    %300 = vmatprep.subr.mxu0 0.0
    %301 = vmatpush1.msra.mxu0 0.0
    %302 = vmatprep.subr.mxu0 0.0
    %303 = vmatpush1.msra.mxu0 0.0
    %304 = vmatprep.subr.mxu0 0.0
    %305 = vmatpush1.msra.mxu0 0.0
    %306 = vmatprep.subr.mxu0 0.0
    %307 = vmatpush1.msra.mxu0 0.0
    %308 = vmatprep.subr.mxu0 0.0
    %309 = vmatpush1.msra.mxu0 0.0
    %310 = vmatprep.subr.mxu0 0.0
    %311 = vmatpush1.msra.mxu0 0.0
    %312 = vmatprep.subr.mxu0 0.0
    %313 = vmatpush1.msra.mxu0 0.0
    %314 = vmatprep.subr.mxu0 0.0
    %315 = vmatpush1.msra.mxu0 0.0
    %316 = vmatprep.subr.mxu0 0.0
    %317 = vmatpush1.msra.mxu0 0.0
    %318 = vmatprep.subr.mxu0 0.0
    %319 = vmatpush1.msra.mxu0 0.0
    %320 = vmatprep.subr.mxu0 0.0
    %321 = vmatpush1.msra.mxu0 0.0
    %322 = vmatprep.subr.mxu0 0.0
    %323 = vmatpush1.msra.mxu0 0.0
    %324 = vmatprep.subr.mxu0 0.0
    %325 = vmatpush1.msra.mxu0 0.0
    %326 = vmatprep.subr.mxu0 0.0
    %327 = vmatpush1.msra.mxu0 0.0
    %328 = vmatprep.subr.mxu0 0.0
    %329 = vmatpush1.msra.mxu0 0.0
    %330 = vmatprep.subr.mxu0 0.0
    %331 = vmatpush1.msra.mxu0 0.0
    %332 = vmatprep.subr.mxu0 0.0
    %333 = vmatpush1.msra.mxu0 0.0
    %334 = vmatprep.subr.mxu0 0.0
    %335 = vmatpush1.msra.mxu0 0.0
    %336 = vmatprep.subr.mxu0 0.0
    %337 = vmatpush1.msra.mxu0 0.0
    %338 = vmatprep.subr.mxu0 0.0
    %339 = vmatpush1.msra.mxu0 0.0
    %340 = vmatprep.subr.mxu0 0.0
    %341 = vmatpush1.msra.mxu0 0.0
    %342 = vmatprep.mubr.f32.mxu0 0.0
    %343 = vmatmul.mubr.f32.gmra.mrb[0].mxu0 %v267
    %v344 = vpop.f32.mrb[0].mxu0
    %v345 = vadd.f32 %v248, %v344
    %v346 = vpop.f32.mrb[0].mxu0
    %347 = vmatprep.mubr.f32.mxu0 0.0
    %348 = vmatmul.mubr.f32.gmra.mrb[0].mxu0 %v270
    %v349 = vpop.f32.mrb[0].mxu0
    %v350 = vadd.f32 %v253, %v349
    %v351 = vpop.f32.mrb[0].mxu0
    %352 = vmatprep.mubr.f32.mxu0 0.0
    %353 = vmatmul.mubr.f32.gmra.mrb[0].mxu0 %v273
    %v354 = vpop.f32.mrb[0].mxu0
    %v355 = vadd.f32 %v258, %v354
    %v356 = vpop.f32.mrb[0].mxu0
    %357 = vmatprep.mubr.f32.mxu0 0.0
    %358 = vmatmul.mubr.f32.gmra.mrb[0].mxu0 %v276
    %v359 = vpop.f32.mrb[0].mxu0
    %v360 = vadd.f32 %v263, %v359
    %v361 = vpop.f32.mrb[0].mxu0
    %362 = vdwg.mxu0
    %v363 = vxor.u32 %v345, 2147483648
    %v364 = vxor.u32 %v350, 2147483648
    %v365 = vxor.u32 %v355, 2147483648
    %v366 = vxor.u32 %v360, 2147483648
    %v367 = vmul.f32 %v363, 1.442695
    %v368 = vpow.pop %v367
    %v369 = vmul.f32 %v364, 1.442695
    %v370 = vpow.pop %v369
    %v371 = vmul.f32 %v365, 1.442695
    %v372 = vpow.pop %v371
    %v373 = vmul.f32 %v366, 1.442695
    %v374 = vpow.pop %v373
    %v375 = vadd.f32 %v368, 1.0
    %v376 = vadd.f32 %v370, 1.0
    %v377 = vadd.f32 %v372, 1.0
    %v378 = vadd.f32 %v374, 1.0
    %v379 = vrcp.pop %v375
    %v380 = vmul.f32 1.0, %v379
    %v381 = vrcp.pop %v376
    %v382 = vmul.f32 1.0, %v381
    %v383 = vrcp.pop %v377
    %v384 = vmul.f32 1.0, %v383
    %v385 = vrcp.pop %v378
    %v386 = vmul.f32 1.0, %v385
    %v387 = vmul.f32 %v345, %v380
    %v388 = vmul.f32 %v350, %v382
    %v389 = vmul.f32 %v355, %v384
    %v390 = vmul.f32 %v360, %v386
    %v391 = vld [vmem:[%s7] sm:$0xff]
    %v392 = vld [vmem:[%s7 + $0x8] sm:$0xff]
    %v393 = vld [vmem:[%s8] sm:$0xff]
    %v394 = vld [vmem:[%s8 + $0x8] sm:$0xff]
    %396 = vset.pattern.permute.xlu0 0
    %397 = vperm.xlu0 %396, %v393
    %v398 = vpop.permute.xlu0 %397
    %401 = vset.pattern.permute.xlu0 0
    %402 = vperm.xlu0 %401, %v394
    %v403 = vpop.permute.xlu0 %402
    %vm405 = vcmask 261120
    %v407 = vsel %vm405, %v391, 0
    %v410 = vsel %vm405, %v392, 0
    %412 = vmatprep.subr.mxu0 0.0
    %413 = vmatpush1.msra.mxu0 %v387
    %414 = vmatprep.subr.mxu0 0.0
    %415 = vmatpush1.msra.mxu0 %v388
    %416 = vmatprep.subr.mxu0 0.0
    %417 = vmatpush1.msra.mxu0 %v389
    %418 = vmatprep.subr.mxu0 0.0
    %419 = vmatpush1.msra.mxu0 %v390
    %420 = vmatprep.subr.mxu0 0.0
    %421 = vmatpush1.msra.mxu0 0.0
    %422 = vmatprep.subr.mxu0 0.0
    %423 = vmatpush1.msra.mxu0 0.0
    %424 = vmatprep.subr.mxu0 0.0
    %425 = vmatpush1.msra.mxu0 0.0
    %426 = vmatprep.subr.mxu0 0.0
    %427 = vmatpush1.msra.mxu0 0.0
    %428 = vmatprep.subr.mxu0 0.0
    %429 = vmatpush1.msra.mxu0 0.0
    %430 = vmatprep.subr.mxu0 0.0
    %431 = vmatpush1.msra.mxu0 0.0
    %432 = vmatprep.subr.mxu0 0.0
    %433 = vmatpush1.msra.mxu0 0.0
    %434 = vmatprep.subr.mxu0 0.0
    %435 = vmatpush1.msra.mxu0 0.0
    %436 = vmatprep.subr.mxu0 0.0
    %437 = vmatpush1.msra.mxu0 0.0
    %438 = vmatprep.subr.mxu0 0.0
    %439 = vmatpush1.msra.mxu0 0.0
    %440 = vmatprep.subr.mxu0 0.0
    %441 = vmatpush1.msra.mxu0 0.0
    %442 = vmatprep.subr.mxu0 0.0
    %443 = vmatpush1.msra.mxu0 0.0
    %444 = vmatprep.subr.mxu0 0.0
    %445 = vmatpush1.msra.mxu0 0.0
    %446 = vmatprep.subr.mxu0 0.0
    %447 = vmatpush1.msra.mxu0 0.0
    %448 = vmatprep.subr.mxu0 0.0
    %449 = vmatpush1.msra.mxu0 0.0
    %450 = vmatprep.subr.mxu0 0.0
    %451 = vmatpush1.msra.mxu0 0.0
    %452 = vmatprep.subr.mxu0 0.0
    %453 = vmatpush1.msra.mxu0 0.0
    %454 = vmatprep.subr.mxu0 0.0
    %455 = vmatpush1.msra.mxu0 0.0
    %456 = vmatprep.subr.mxu0 0.0
    %457 = vmatpush1.msra.mxu0 0.0
    %458 = vmatprep.subr.mxu0 0.0
    %459 = vmatpush1.msra.mxu0 0.0
    %460 = vmatprep.subr.mxu0 0.0
    %461 = vmatpush1.msra.mxu0 0.0
    %462 = vmatprep.subr.mxu0 0.0
    %463 = vmatpush1.msra.mxu0 0.0
    %464 = vmatprep.subr.mxu0 0.0
    %465 = vmatpush1.msra.mxu0 0.0
    %466 = vmatprep.subr.mxu0 0.0
    %467 = vmatpush1.msra.mxu0 0.0
    %468 = vmatprep.subr.mxu0 0.0
    %469 = vmatpush1.msra.mxu0 0.0
    %470 = vmatprep.subr.mxu0 0.0
    %471 = vmatpush1.msra.mxu0 0.0
    %472 = vmatprep.subr.mxu0 0.0
    %473 = vmatpush1.msra.mxu0 0.0
    %474 = vmatprep.subr.mxu0 0.0
    %475 = vmatpush1.msra.mxu0 0.0
    %476 = vmatprep.mubr.f32.mxu0 0.0
    %477 = vmatmul.mubr.f32.gmra.mrb[0].mxu0 %v407
    %v478 = vpop.f32.mrb[0].mxu0
    %v479 = vadd.f32 %v398, %v478
    %v480 = vpop.f32.mrb[0].mxu0
    %481 = vmatprep.mubr.f32.mxu0 0.0
    %482 = vmatmul.mubr.f32.gmra.mrb[0].mxu0 %v410
    %v483 = vpop.f32.mrb[0].mxu0
    %v484 = vadd.f32 %v403, %v483
    %v485 = vpop.f32.mrb[0].mxu0
    %486 = vdwg.mxu0
    %487 = vst [vmem:[#allocation2] sm:$0xff] %v479
    %488 = vst [vmem:[#allocation2 + $0x8] sm:$0xff] %v484
    // Predicated region
    $region38: #{tpu_custom_call.1} parent=1 // pred_check
      _
    $region39: #{tpu_custom_call.1} parent=1 // pred_check_branch
      %490 = sbr.rel (0) target = $region41
    $region40: #{tpu_custom_call.1} parent=1 // pred_region
      %s492 = ssub.s32 256, 256
      %493 = vsyncadd [#allocation3], %s492
      %s494 = sshll.u32 [#allocation2], 4
      %s495 = int_to_ptr.vmem [resolvable:$true] %s494
      %500 = dma.vmem_to_hbm [thread:$0]  %s495, 256, %s9, [#allocation3], 128, 128, 8
    $region41: #{tpu_custom_call.1} parent=1 // pred_fallthru
      _
    // Predicated region
    $region42: #{tpu_custom_call.1} parent=1 // pred_check
      _
    $region43: #{tpu_custom_call.1} parent=1 // pred_check_branch
      %502 = sbr.rel (0) target = $region45
    $region44: #{tpu_custom_call.1} parent=1 // pred_region
      %503 = dma.done [#allocation3], 256
    $region45: #{tpu_custom_call.1} parent=1 // pred_fallthru
      _
    %504 = vsyncpa [#allocation3], 1

</llo_original>
